<compile_context>
chip_gen: v5e
topology: v5e:2x2
jax: 0.10.0
libtpu: 0.0.40
codegen_flags: <defaults>
</compile_context>

<pallas_src>
import numpy as np
import jax
import jax.numpy as jnp
from jax.experimental import pallas as pl
from jax.experimental.pallas import tpu as pltpu

TOKEN2INT = {x: i for i, x in enumerate('().ACGUBEHIMSX')}
VOCAB = len(TOKEN2INT)  # 14


def _round_up(x, m):
    return ((x + m - 1) // m) * m


def fused_embedding_kernel(src_ref, se_ref, pat_ref, tbl_ref, out_ref):
    # src_ref: (blk, 3)        int32 token ids (3 channels: seq/struct/loop)
    # se_ref:  (blk, d_feat)   float32 extra features
    # pat_ref: (3, W)          int32 token patterns, -1 outside channel region
    # tbl_ref: (W, d_out)      float32 fused [se-identity ; block-diag emb]
    # out_ref: (blk, d_out)    float32
    blk = se_ref.shape[0]
    d_feat = se_ref.shape[1]
    W = pat_ref.shape[1]

    src = src_ref[...]
    # One-hot "hit" mask over the fused operand width.  Pattern rows carry -1
    # sentinels outside their channel's lane range (and over the se lanes), so
    # at most one channel matches at any lane and se lanes never match.
    hit = ((src[:, 0:1] == pat_ref[0:1, :]) |
           (src[:, 1:2] == pat_ref[1:2, :]) |
           (src[:, 2:3] == pat_ref[2:3, :]))                    # (blk, W) bool

    # se occupies lanes [0, d_feat) of the fused operand: widen with zeros
    # (no lane shuffle needed) and merge with a single select.
    se_wide = jnp.concatenate(
        [se_ref[...], jnp.zeros((blk, W - d_feat), jnp.float32)], axis=-1)
    operand = jnp.where(hit, jnp.float32(1.0), se_wide)         # (blk, W)

    # Single MXU dot: gather of the 3 embeddings + se pass-through in one shot,
    # followed by ONE full-width lane-dense store of the output tile.
    out_ref[...] = jnp.dot(operand, tbl_ref[...],
                           preferred_element_type=jnp.float32)


def make_fused_embedding_params(table, d_feat):
    """Build, ONCE at model init, the fused operand->output table and the
    resident token-pattern constants used by the kernel.

    table: (V, n_emb) embedding weight.
    Returns (pat (3, W) int32, fused_tbl (W, d_out) float32) with
    W = d_feat + 3*V and d_out = 3*n_emb + d_feat.
    """
    t = np.asarray(table, dtype=np.float32)
    V, n_emb = t.shape
    assert V == VOCAB
    W = d_feat + 3 * V
    d_out = 3 * n_emb + d_feat

    tbl = np.zeros((W, d_out), np.float32)
    # se pass-through: identity into the last d_feat output columns.
    tbl[:d_feat, 3 * n_emb:] = np.eye(d_feat, dtype=np.float32)
    # Block-diagonal embedding table: channel j's vocab rows -> output columns
    # [j*n_emb, (j+1)*n_emb), matching PyTorch's reshape(B, L, 3*n_emb) layout.
    for j in range(3):
        tbl[d_feat + j * V: d_feat + (j + 1) * V,
            j * n_emb: (j + 1) * n_emb] = t

    pat = np.full((3, W), -1, np.int32)
    for j in range(3):
        pat[j, d_feat + j * V: d_feat + (j + 1) * V] = np.arange(V, dtype=np.int32)

    return jnp.asarray(pat), jnp.asarray(tbl)


def fused_embedding(src, se, pat, fused_tbl, *, block_rows=4096):
    """Pallas equivalent of FusedEmbedding.forward(src, se).

    src:  (B, L, 3)      integer token ids
    se:   (B, L, d_feat) float features
    pat, fused_tbl: from make_fused_embedding_params (built once at init)
    returns (B, L, 3*n_emb + d_feat) float32
    """
    B, L, C = src.shape
    assert C == 3, "FusedEmbedding expects 3 token channels (seq/struct/loop)"
    d_feat = se.shape[-1]
    W, d_out = fused_tbl.shape
    assert W == d_feat + 3 * VOCAB

    rows = B * L
    src2 = src.reshape(rows, 3).astype(jnp.int32)
    se2 = se.reshape(rows, d_feat).astype(jnp.float32)

    # Row block: multiple of 8 sublanes; large to amortize the ~0.35us/step
    # overhead, capped at ceil(rows/2) so the "parallel" grid splits ~evenly
    # across v7x's two TensorCores, and at 4096 so the double-buffered tiles
    # (inputs pad to 128 lanes, output to 256) stay well under the VMEM limit.
    blk = min(block_rows, 4096, _round_up(pl.cdiv(rows, 2), 8))
    blk = max(8, (blk // 8) * 8)
    n_blk = pl.cdiv(rows, blk)   # ragged last block: Pallas masks OOB writes

    out = pl.pallas_call(
        fused_embedding_kernel,
        out_shape=jax.ShapeDtypeStruct((rows, d_out), jnp.float32),
        grid_spec=pl.GridSpec(
            grid=(n_blk,),
            in_specs=[
                pl.BlockSpec((blk, 3), lambda i: (i, 0)),
                pl.BlockSpec((blk, d_feat), lambda i: (i, 0)),
                # Constant index_map -> pattern / fused table stay resident.
                pl.BlockSpec((3, W), lambda i: (0, 0)),
                pl.BlockSpec((W, d_out), lambda i: (0, 0)),
            ],
            out_specs=pl.BlockSpec((blk, d_out), lambda i: (i, 0)),
        ),
        compiler_params=pltpu.CompilerParams(
            dimension_semantics=("parallel",),
            vmem_limit_bytes=32 * 1024 * 1024),
    )(src2, se2, pat, fused_tbl)

    return out.reshape(B, L, d_out)


def _reference(src, se, table):
    B, L, _ = src.shape
    n_emb = table.shape[1]
    emb = jnp.take(jnp.asarray(table, jnp.float32), src.astype(jnp.int32), axis=0)
    emb = emb.reshape(B, L, 3 * n_emb)
    return jnp.concatenate([emb, se.astype(jnp.float32)], axis=2)


if __name__ == "__main__":
    key = jax.random.PRNGKey(0)

    # --- test 1: small shapes (two tiny row blocks, exact cover) ---
    B, L, n_emb, d_feat = 2, 8, 32, 10  # d_feat = 2*5 as in FusedEmbedding.d_out()
    k_src, k_se, k_emb = jax.random.split(key, 3)
    src = jax.random.randint(k_src, (B, L, 3), 0, VOCAB, dtype=jnp.int32)
    se = jax.random.normal(k_se, (B, L, d_feat), dtype=jnp.float32)
    table = jax.random.normal(k_emb, (VOCAB, n_emb), dtype=jnp.float32)

    pat, fused_tbl = make_fused_embedding_params(table, d_feat)  # once, at init
    out = jax.block_until_ready(fused_embedding(src, se, pat, fused_tbl))
    ref = _reference(src, se, table)
    assert out.shape == (B, L, 3 * n_emb + d_feat), out.shape
    assert jnp.allclose(out, ref, atol=1e-5), float(jnp.max(jnp.abs(out - ref)))

    # --- test 2: model-size n_emb, ragged (partial) last block exercised ---
    B2, L2, n_emb2 = 4, 300, 50          # rows = 1200 -> blocks 512, 512, 176
    k_src2, k_se2, k_emb2 = jax.random.split(jax.random.PRNGKey(1), 3)
    src2 = jax.random.randint(k_src2, (B2, L2, 3), 0, VOCAB, dtype=jnp.int32)
    se2 = jax.random.normal(k_se2, (B2, L2, d_feat), dtype=jnp.float32)
    table2 = jax.random.normal(k_emb2, (VOCAB, n_emb2), dtype=jnp.float32)

    pat2, fused_tbl2 = make_fused_embedding_params(table2, d_feat)
    out2 = jax.block_until_ready(
        fused_embedding(src2, se2, pat2, fused_tbl2, block_rows=512))
    ref2 = _reference(src2, se2, table2)
    assert out2.shape == (B2, L2, 3 * n_emb2 + d_feat), out2.shape
    assert jnp.allclose(out2, ref2, atol=1e-5), float(jnp.max(jnp.abs(out2 - ref2)))

    print("KERNEL_OK")
</pallas_src>

<mosaic_0001>
module attributes {stable_mosaic.version = 11 : i64} {
  func.func @fused_embedding_kernel(%arg0: i32, %arg1: memref<8x3xi32, #tpu.memory_space<vmem>>, %arg2: memref<8x10xf32, #tpu.memory_space<vmem>>, %arg3: memref<3x52xi32, #tpu.memory_space<vmem>>, %arg4: memref<52x106xf32, #tpu.memory_space<vmem>>, %arg5: memref<8x106xf32, #tpu.memory_space<vmem>>) attributes {dimension_semantics = [#tpu.dimension_semantics<parallel>], iteration_bounds = array<i64: 2>, scalar_prefetch = 0 : i64, scratch_operands = 0 : i64, tpu.core_type = #tpu.core_type<tc>, window_params = [{transform_indices = @transform_0, window_bounds = array<i64: 8, 3>}, {transform_indices = @transform_1, window_bounds = array<i64: 8, 10>}, {pipeline_mode = #tpu.pipeline_mode<synchronous>, transform_indices = @transform_2, window_bounds = array<i64: 3, 52>}, {pipeline_mode = #tpu.pipeline_mode<synchronous>, transform_indices = @transform_3, window_bounds = array<i64: 52, 106>}, {transform_indices = @transform_4, window_bounds = array<i64: 8, 106>}]} {
    %c0 = arith.constant 0 : index
    %c0_0 = arith.constant 0 : index
    %0 = vector.load %arg1[%c0, %c0_0] : memref<8x3xi32, #tpu.memory_space<vmem>>, vector<8x3xi32>
    %1 = vector.extract_strided_slice %0 {offsets = [0, 0], sizes = [8, 1], strides = [1, 1]} : vector<8x3xi32> to vector<8x1xi32>
    %c0_1 = arith.constant 0 : index
    %c0_2 = arith.constant 0 : index
    %2 = vector.load %arg3[%c0_1, %c0_2] : memref<3x52xi32, #tpu.memory_space<vmem>>, vector<1x52xi32>
    %3 = vector.broadcast %1 : vector<8x1xi32> to vector<8x52xi32>
    %4 = vector.broadcast %2 : vector<1x52xi32> to vector<8x52xi32>
    %5 = arith.cmpi eq, %3, %4 : vector<8x52xi32>
    %6 = vector.extract_strided_slice %0 {offsets = [0, 1], sizes = [8, 1], strides = [1, 1]} : vector<8x3xi32> to vector<8x1xi32>
    %c1 = arith.constant 1 : index
    %c0_3 = arith.constant 0 : index
    %7 = vector.load %arg3[%c1, %c0_3] : memref<3x52xi32, #tpu.memory_space<vmem>>, vector<1x52xi32>
    %8 = vector.broadcast %6 : vector<8x1xi32> to vector<8x52xi32>
    %9 = vector.broadcast %7 : vector<1x52xi32> to vector<8x52xi32>
    %10 = arith.cmpi eq, %8, %9 : vector<8x52xi32>
    %11 = arith.ori %5, %10 : vector<8x52xi1>
    %12 = vector.extract_strided_slice %0 {offsets = [0, 2], sizes = [8, 1], strides = [1, 1]} : vector<8x3xi32> to vector<8x1xi32>
    %c2 = arith.constant 2 : index
    %c0_4 = arith.constant 0 : index
    %13 = vector.load %arg3[%c2, %c0_4] : memref<3x52xi32, #tpu.memory_space<vmem>>, vector<1x52xi32>
    %14 = vector.broadcast %12 : vector<8x1xi32> to vector<8x52xi32>
    %15 = vector.broadcast %13 : vector<1x52xi32> to vector<8x52xi32>
    %16 = arith.cmpi eq, %14, %15 : vector<8x52xi32>
    %17 = arith.ori %11, %16 : vector<8x52xi1>
    %c0_5 = arith.constant 0 : index
    %c0_6 = arith.constant 0 : index
    %18 = vector.load %arg2[%c0_5, %c0_6] : memref<8x10xf32, #tpu.memory_space<vmem>>, vector<8x10xf32>
    %cst = arith.constant 0.000000e+00 : f32
    %19 = vector.broadcast %cst : f32 to vector<8x42xf32>
    %20 = tpu.concatenate %18, %19 in 1 : vector<8x10xf32>, vector<8x42xf32> -> vector<8x52xf32>
    %cst_7 = arith.constant 1.000000e+00 : f32
    %21 = vector.broadcast %cst_7 : f32 to vector<8x52xf32>
    %22 = arith.select %17, %21, %20 : vector<8x52xi1>, vector<8x52xf32>
    %c0_8 = arith.constant 0 : index
    %c0_9 = arith.constant 0 : index
    %23 = vector.load %arg4[%c0_8, %c0_9] : memref<52x106xf32, #tpu.memory_space<vmem>>, vector<52x106xf32>
    %cst_10 = arith.constant dense<0.000000e+00> : vector<8x106xf32>
    %24 = tpu.matmul %22, %23, %cst_10 {dimension_numbers = #tpu.dot_dimension_numbers<[1], [0], [0], [1], [0, 0, 1, 1], [], []>} : vector<8x52xf32>, vector<52x106xf32>, vector<8x106xf32> -> vector<8x106xf32>
    %c0_11 = arith.constant 0 : index
    %c0_12 = arith.constant 0 : index
    %25 = vector.load %arg5[%c0_11, %c0_12] : memref<8x106xf32, #tpu.memory_space<vmem>>, vector<8x106xf32>
    tpu.vector_store %arg5[%c0_11, %c0_12], %24 {strides = array<i32>} : memref<8x106xf32, #tpu.memory_space<vmem>>, vector<8x106xf32>,
    return
  }
  func.func @transform_0(%arg0: i32) -> (i32, i32) {
    %c0_i32 = arith.constant 0 : i32
    %c0_i32_0 = arith.constant 0 : i32
    return %arg0, %c0_i32 : i32, i32
  }
  func.func @transform_1(%arg0: i32) -> (i32, i32) {
    %c0_i32 = arith.constant 0 : i32
    %c0_i32_0 = arith.constant 0 : i32
    return %arg0, %c0_i32 : i32, i32
  }
  func.func @transform_2(%arg0: i32) -> (i32, i32) {
    %c0_i32 = arith.constant 0 : i32
    %c0_i32_0 = arith.constant 0 : i32
    %c0_i32_1 = arith.constant 0 : i32
    return %c0_i32, %c0_i32_0 : i32, i32
  }
  func.func @transform_3(%arg0: i32) -> (i32, i32) {
    %c0_i32 = arith.constant 0 : i32
    %c0_i32_0 = arith.constant 0 : i32
    %c0_i32_1 = arith.constant 0 : i32
    return %c0_i32, %c0_i32_0 : i32, i32
  }
  func.func @transform_4(%arg0: i32) -> (i32, i32) {
    %c0_i32 = arith.constant 0 : i32
    %c0_i32_0 = arith.constant 0 : i32
    return %arg0, %c0_i32 : i32, i32
  }
}

</mosaic_0001>

<llo_original>
// kernel: tpu_custom_call.1
$region0: #{tpu_custom_call.1}
  #allocation0 [shape = 'u32[]', space=smem, size = 0x4, offset = 0x4, fixed_abs, tag = 'smem constant byte address 0x4 - core index']
  #allocation1 [shape = 'u32[72,128]{1,0:T(1,128)}', space=vmem, size = 0x9000, scoped, tag = 'internal scratch']
  %s0 = inlined_call_operand.vmem [shape: s32[16,3], index: 0, kind: input, shape index: {}]
  %s1 = inlined_call_operand.vmem [shape: f32[16,10], index: 1, kind: input, shape index: {}]
  %s2 = inlined_call_operand.vmem [shape: s32[3,52], index: 2, kind: input, shape index: {}]
  %s3 = inlined_call_operand.hbm [shape: f32[52,106], index: 3, kind: input, shape index: {}]
  %s4 = inlined_call_operand.hbm [shape: f32[16,106], index: 4, kind: output, shape index: {}]
  %s5 = sld [smem:[#allocation0]]
  $region53: #{tpu_custom_call.1} parent=0
    _
  %s7 = ssub.s32 1, %s5
  %s8 = scalar_select 0, %s7, %s5
  $region1: #{tpu_custom_call.1} parent=0
    #allocation2 [shape = 'u8[28672]{0}', space=vmem, size = 0x7000, scoped, tag = 'input window, operand 3, single buffered']
    #allocation3 [shape = 's32[2]{0}', space=sflag, size = 0x8, scoped, tag = 'scoped memory for tpu_custom_call.1']
    #allocation4 [shape = 's32[2]{0}', space=sflag, size = 0x8, scoped, tag = 'scoped memory for tpu_custom_call.1']
    #allocation5 [shape = 'u8[8192]{0}', space=vmem, size = 0x2000, scoped, tag = 'output window, operand 0']
    %9 = vsyncpa [#allocation3], 0
    %10 = vsyncpa [#allocation4], 0
    %s11 = scalar_lea.sflag [#allocation4], 1
    %12 = vsyncpa %s11, 0
    loop: start=0, step=1, limit=4
    $region2: #{tpu_custom_call.1} parent=1 // loop_pre_header
      _
    $region3: #{tpu_custom_call.1} parent=1 // loop_header
      %s14 = sphi 0, %s18
      %p15 = scmp.ge.s32.totalorder %s14, 4
      %s24 = sphi 0, %s26
      %s27 = sphi 0, %s24
      %s28 = sphi 0, %s27
      %s44 = sphi 0, %s28
      %s50 = sphi 0, %s52
      %s53 = sphi 0, %s50
      %s54 = sphi 0, %s53
      %s70 = sphi 0, %s54
      %s74 = sphi 0, %s74
      %s76 = sphi 0, %s74
      %s77 = sphi 0, %s76
      %s91 = sphi 0, %s77
      %s95 = sphi 0, %s95
      %s97 = sphi 0, %s95
      %s98 = sphi 0, %s97
      %s112 = sphi 0, %s98
      %s118 = sphi 0, %s120
      %s121 = sphi 0, %s118
      %s122 = sphi 0, %s121
      %s138 = sphi 0, %s122
    $region4: #{tpu_custom_call.1} parent=1 // loop_header_branch
      %17 = sbr.rel (%p15) target = $region8
    $region5: #{tpu_custom_call.1} parent=1 // loop_body
      %s19 = ssub.s32 %s14, 1
      %s20 = ssub.s32 %s14, 2
      %s21 = sadd.s32 %s14, 1
      %s22 = ssub.s32 %s14, %s21
      %p23 = scmp.eq.s32.totalorder %s22, 0
      %s25 = sadd.s32 %s24, 1
      %s26 = scalar_select %p23, %s24, %s25
      %p29 = pneg %p23
      %p30 = scmp.eq.s32.totalorder %s14, 1
      %p31 = por %p29, %p30
      %p32 = scmp.ne.s32.totalorder %s24, %s27
      %p33 = scmp.eq.s32.totalorder %s14, 0
      %p34 = por %p32, %p33
      %p35 = scmp.ne.s32.totalorder %s24, %s27
      %p36 = scmp.eq.s32.totalorder %s19, 1
      %p37 = por %p35, %p36
      %p38 = scmp.ne.s32.totalorder %s27, %s28
      %p39 = scmp.eq.s32.totalorder %s19, 0
      %p40 = por %p38, %p39
      %p41 = scmp.ne.s32.totalorder %s27, %s28
      %p42 = scmp.eq.s32.totalorder %s20, 1
      %p43 = por %p41, %p42
      %p45 = scmp.ne.s32.totalorder %s28, %s44
      %p46 = scmp.eq.s32.totalorder %s20, 0
      %p47 = por %p45, %p46
      %s48 = ssub.s32 %s14, %s21
      %p49 = scmp.eq.s32.totalorder %s48, 0
      %s51 = sadd.s32 %s50, 1
      %s52 = scalar_select %p49, %s50, %s51
      %p55 = pneg %p49
      %p56 = scmp.eq.s32.totalorder %s14, 1
      %p57 = por %p55, %p56
      %p58 = scmp.ne.s32.totalorder %s50, %s53
      %p59 = scmp.eq.s32.totalorder %s14, 0
      %p60 = por %p58, %p59
      %p61 = scmp.ne.s32.totalorder %s50, %s53
      %p62 = scmp.eq.s32.totalorder %s19, 1
      %p63 = por %p61, %p62
      %p64 = scmp.ne.s32.totalorder %s53, %s54
      %p65 = scmp.eq.s32.totalorder %s19, 0
      %p66 = por %p64, %p65
      %p67 = scmp.ne.s32.totalorder %s53, %s54
      %p68 = scmp.eq.s32.totalorder %s20, 1
      %p69 = por %p67, %p68
      %p71 = scmp.ne.s32.totalorder %s54, %s70
      %p72 = scmp.eq.s32.totalorder %s20, 0
      %p73 = por %p71, %p72
      %s75 = sadd.s32 %s74, 1
      %p78 = scmp.eq.s32.totalorder %s14, 1
      %p79 = scmp.ne.s32.totalorder %s74, %s76
      %p80 = scmp.eq.s32.totalorder %s14, 0
      %p81 = por %p79, %p80
      %p82 = scmp.ne.s32.totalorder %s74, %s76
      %p83 = scmp.eq.s32.totalorder %s19, 1
      %p84 = por %p82, %p83
      %p85 = scmp.ne.s32.totalorder %s76, %s77
      %p86 = scmp.eq.s32.totalorder %s19, 0
      %p87 = por %p85, %p86
      %p88 = scmp.ne.s32.totalorder %s76, %s77
      %p89 = scmp.eq.s32.totalorder %s20, 1
      %p90 = por %p88, %p89
      %p92 = scmp.ne.s32.totalorder %s77, %s91
      %p93 = scmp.eq.s32.totalorder %s20, 0
      %p94 = por %p92, %p93
      %s96 = sadd.s32 %s95, 1
      %p99 = scmp.eq.s32.totalorder %s14, 1
      %p100 = scmp.ne.s32.totalorder %s95, %s97
      %p101 = scmp.eq.s32.totalorder %s14, 0
      %p102 = por %p100, %p101
      %p103 = scmp.ne.s32.totalorder %s95, %s97
      %p104 = scmp.eq.s32.totalorder %s19, 1
      %p105 = por %p103, %p104
      %p106 = scmp.ne.s32.totalorder %s97, %s98
      %p107 = scmp.eq.s32.totalorder %s19, 0
      %p108 = por %p106, %p107
      %p109 = scmp.ne.s32.totalorder %s97, %s98
      %p110 = scmp.eq.s32.totalorder %s20, 1
      %p111 = por %p109, %p110
      %p113 = scmp.ne.s32.totalorder %s98, %s112
      %p114 = scmp.eq.s32.totalorder %s20, 0
      %p115 = por %p113, %p114
      %s116 = ssub.s32 %s14, %s21
      %p117 = scmp.eq.s32.totalorder %s116, 0
      %s119 = sadd.s32 %s118, 1
      %s120 = scalar_select %p117, %s118, %s119
      %p123 = pneg %p117
      %p124 = scmp.eq.s32.totalorder %s14, 1
      %p125 = por %p123, %p124
      %p126 = scmp.ne.s32.totalorder %s118, %s121
      %p127 = scmp.eq.s32.totalorder %s14, 0
      %p128 = por %p126, %p127
      %p129 = scmp.ne.s32.totalorder %s118, %s121
      %p130 = scmp.eq.s32.totalorder %s19, 1
      %p131 = por %p129, %p130
      %p132 = scmp.ne.s32.totalorder %s121, %s122
      %p133 = scmp.eq.s32.totalorder %s19, 0
      %p134 = por %p132, %p133
      %p135 = scmp.ne.s32.totalorder %s121, %s122
      %p136 = scmp.eq.s32.totalorder %s20, 1
      %p137 = por %p135, %p136
      %p139 = scmp.ne.s32.totalorder %s122, %s138
      %p140 = scmp.eq.s32.totalorder %s20, 0
      %p141 = por %p139, %p140
      %p142 = scmp.le.s32.totalorder 1, %s14
      %p143 = scmp.lt.s32.totalorder %s14, 3
      %p144 = pnand %p142, %p143
      %p145 = pneg %p144
      // Predicated region
      $region9: #{tpu_custom_call.1} parent=5 // pred_check
        _
      $region10: #{tpu_custom_call.1} parent=5 // pred_check_branch
        %147 = sbr.rel (%p144) target = $region12
      $region11: #{tpu_custom_call.1} parent=5 // pred_region
        %s148 = ssub.s32 %s14, 1
        // Predicated region
        $region13: #{tpu_custom_call.1} parent=11 // pred_check
          %p149 = pneg %p87
        $region14: #{tpu_custom_call.1} parent=11 // pred_check_branch
          %151 = sbr.rel (%p149) target = $region16
        $region15: #{tpu_custom_call.1} parent=11 // pred_region
          _
        $region16: #{tpu_custom_call.1} parent=11 // pred_fallthru
          _
        // Predicated region
        $region17: #{tpu_custom_call.1} parent=11 // pred_check
          %p152 = pneg %p108
        $region18: #{tpu_custom_call.1} parent=11 // pred_check_branch
          %154 = sbr.rel (%p152) target = $region20
        $region19: #{tpu_custom_call.1} parent=11 // pred_region
          %156 = vsyncadd [#allocation3], 0
          %s157 = sshll.u32 %s3, 4
          %s158 = int_to_ptr.hbm [resolvable:$true] %s157
          %s159 = sshll.u32 [#allocation2], 4
          %s160 = int_to_ptr.vmem [resolvable:$true] %s159
          %165 = dma.hbm_to_vmem [thread:$0]  %s158, 896, %s160, [#allocation3], 128, 128, 8
        $region20: #{tpu_custom_call.1} parent=11 // pred_fallthru
          _
      $region12: #{tpu_custom_call.1} parent=5 // pred_fallthru
        _
      %p166 = scmp.lt.s32.totalorder %s14, 2
      // Predicated region
      $region21: #{tpu_custom_call.1} parent=5 // pred_check
        %p167 = pneg %p166
      $region22: #{tpu_custom_call.1} parent=5 // pred_check_branch
        %169 = sbr.rel (%p167) target = $region24
      $region23: #{tpu_custom_call.1} parent=5 // pred_region
        // Predicated region
        $region25: #{tpu_custom_call.1} parent=23 // pred_check
          %p170 = pneg %p34
        $region26: #{tpu_custom_call.1} parent=23 // pred_check_branch
          %172 = sbr.rel (%p170) target = $region28
        $region27: #{tpu_custom_call.1} parent=23 // pred_region
          %p173 = scmp.lt.s32.totalorder %s14, 1
          %s174 = scalar_select %p173, %s14, 1
          %s175 = smul.addr %s174, 8
          %s176 = scalar_lea.vmem %s0, %s175
        $region28: #{tpu_custom_call.1} parent=23 // pred_fallthru
          _
        // Predicated region
        $region29: #{tpu_custom_call.1} parent=23 // pred_check
          %p177 = pneg %p60
        $region30: #{tpu_custom_call.1} parent=23 // pred_check_branch
          %179 = sbr.rel (%p177) target = $region32
        $region31: #{tpu_custom_call.1} parent=23 // pred_region
          %p180 = scmp.lt.s32.totalorder %s14, 1
          %s181 = scalar_select %p180, %s14, 1
          %s182 = smul.addr %s181, 8
          %s183 = scalar_lea.vmem %s1, %s182
        $region32: #{tpu_custom_call.1} parent=23 // pred_fallthru
          _
      $region24: #{tpu_custom_call.1} parent=5 // pred_fallthru
        _
      %p184 = scmp.le.s32.totalorder 1, %s14
      %p185 = scmp.lt.s32.totalorder %s14, 3
      %p186 = pnand %p184, %p185
      %p187 = pneg %p186
      // Predicated region
      $region33: #{tpu_custom_call.1} parent=5 // pred_check
        _
      $region34: #{tpu_custom_call.1} parent=5 // pred_check_branch
        %189 = sbr.rel (%p186) target = $region36
      $region35: #{tpu_custom_call.1} parent=5 // pred_region
        %s190 = ssub.s32 %s14, 1
        // Predicated region
        $region37: #{tpu_custom_call.1} parent=35 // pred_check
          %p191 = pneg %p108
        $region38: #{tpu_custom_call.1} parent=35 // pred_check_branch
          %193 = sbr.rel (%p191) target = $region40
        $region39: #{tpu_custom_call.1} parent=35 // pred_region
          %195 = dma.done [#allocation3], 896
        $region40: #{tpu_custom_call.1} parent=35 // pred_fallthru
          _
        %p196 = scmp.lt.s32.totalorder %s19, 1
        %s197 = scalar_select %p196, %s19, 1
        %s198 = smul.addr %s197, 8
        %s199 = scalar_lea.vmem %s0, %s198
        %p200 = pneg %p40
        %p201 = pneg %p37
        %p202 = scmp.lt.s32.totalorder %s19, 1
        %s203 = scalar_select %p202, %s19, 1
        %s204 = smul.addr %s203, 8
        %s205 = scalar_lea.vmem %s1, %s204
        %p206 = pneg %p66
        %p207 = pneg %p63
        %p208 = pneg %p87
        %p209 = pneg %p84
        %p210 = pneg %p108
        %p211 = pneg %p105
        %p212 = pneg %p134
        %p213 = pneg %p131
        %s214 = sand.u32 %s121, 1
        %s215 = scalar_lea.sflag [#allocation4], %s214
        %s216 = sand.u32 %s121, 1
        %s217 = smul.addr %s216, 8
        %s218 = scalar_lea.vmem [#allocation5], %s217
        %p219 = scmp.lt.s32.totalorder %s19, 1
        %s220 = scalar_select %p219, %s19, 1
        %s221 = smul.addr %s220, 8
        %s222 = scalar_lea.vmem %s0, %s221
        %p223 = scmp.lt.s32.totalorder %s19, 1
        %s224 = scalar_select %p223, %s19, 1
        %s225 = smul.addr %s224, 8
        %s226 = scalar_lea.vmem %s1, %s225
        %v227 = vld [vmem:[%s222] sm:$0xff]
        %v228 = vld [vmem:[%s2] sm:$0x1]
        %229 = vset.pattern.permute.xlu0 0
        %230 = vperm.xlu0 %229, %v227
        %v231 = vpop.permute.xlu0 %230
        %v232 = vperm.slane %v228, 0
        %vm233 = vcmp.eq.s32.totalorder %v231, %v232
        %v234 = vld [vmem:[%s2 + $0x1] sm:$0x1]
        %235 = vset.pattern.permute.xlu0 1
        %236 = vperm.xlu0 %235, %v227
        %v237 = vpop.permute.xlu0 %236
        %v238 = vperm.slane %v234, 0
        %vm239 = vcmp.eq.s32.totalorder %v237, %v238
        %vm240 = vmor %vm233, %vm239
        %v241 = vld [vmem:[%s2 + $0x2] sm:$0x1]
        %242 = vset.pattern.permute.xlu0 2
        %243 = vperm.xlu0 %242, %v227
        %v244 = vpop.permute.xlu0 %243
        %v245 = vperm.slane %v241, 0
        %vm246 = vcmp.eq.s32.totalorder %v244, %v245
        %vm247 = vmor %vm240, %vm246
        %v248 = vld [vmem:[%s226] sm:$0xff]
        %vm249 = vcmask 80896
        %v250 = vsel %vm249, %v248, 0.0
        %v251 = vsel %vm247, 1.0, %v250
        %v252 = vld [vmem:[#allocation2] sm:$0xff]
        %v253 = vld [vmem:[#allocation2 + $0x8] sm:$0xff]
        %v254 = vld [vmem:[#allocation2 + $0x10] sm:$0xff]
        %v255 = vld [vmem:[#allocation2 + $0x18] sm:$0xff]
        %v256 = vld [vmem:[#allocation2 + $0x20] sm:$0xff]
        %v257 = vld [vmem:[#allocation2 + $0x28] sm:$0xff]
        %v258 = vld [vmem:[#allocation2 + $0x30] sm:$0xf]
        %vm259 = vcmask 424960
        %v261 = vsel %vm259, %v251, 0
        %vm263 = vcmask 1043456
        %v265 = vsel %vm263, %v258, 0
        %267 = vmatpush.msra.mxu0 0.0
        %268 = vmatpush.msra.mxu0 0.0
        %269 = vmatpush.msra.mxu0 0.0
        %270 = vmatpush.msra.mxu0 0.0
        %271 = vmatpush.msra.mxu0 0.0
        %272 = vmatpush.msra.mxu0 0.0
        %273 = vmatpush.msra.mxu0 0.0
        %274 = vmatpush.msra.mxu0 0.0
        %275 = vmatpush.msra.mxu0 0.0
        %276 = vmatpush.msra.mxu0 %v265
        %277 = vmatpush.msra.mxu0 %v257
        %278 = vmatpush.msra.mxu0 %v256
        %279 = vmatpush.msra.mxu0 %v255
        %280 = vmatpush.msra.mxu0 %v254
        %281 = vmatpush.msra.mxu0 %v253
        %282 = vmatpush.msra.mxu0 %v252
        %283 = vmatmul.f32.gmra.mxu0 %v261
        %v284 = vpop.f32.mrf.mxu0
        %v285 = vadd.f32 0.0, %v284
        %286 = vdwg.mxu0
        %vm287 = vcmask 867328
        %288 = vst.msk [vmem:[%s218] sm:$0xff] %vm287, %v285
        %s289 = sand.u32 %s121, 1
        %s290 = scalar_lea.sflag [#allocation4], %s289
        %s291 = sand.u32 %s121, 1
        %s292 = smul.addr %s291, 8
        %s293 = scalar_lea.vmem [#allocation5], %s292
        // Predicated region
        $region41: #{tpu_custom_call.1} parent=35 // pred_check
          %p294 = pneg %p131
        $region42: #{tpu_custom_call.1} parent=35 // pred_check_branch
          %296 = sbr.rel (%p294) target = $region44
        $region43: #{tpu_custom_call.1} parent=35 // pred_region
          %298 = vsyncadd %s290, 0
          %s299 = smul.addr %s19, 8
          %s300 = scalar_lea.hbm %s4, %s299
          %s302 = sshll.u32 %s293, 4
          %s303 = int_to_ptr.vmem [resolvable:$true] %s302
          %s304 = sshll.u32 %s300, 4
          %s305 = int_to_ptr.hbm [resolvable:$true] %s304
          %307 = dma.vmem_to_hbm [thread:$0]  %s303, 128, %s305, %s290
        $region44: #{tpu_custom_call.1} parent=35 // pred_fallthru
          _
      $region36: #{tpu_custom_call.1} parent=5 // pred_fallthru
        _
      %p308 = scmp.le.s32.totalorder 2, %s14
      // Predicated region
      $region45: #{tpu_custom_call.1} parent=5 // pred_check
        %p309 = pneg %p308
      $region46: #{tpu_custom_call.1} parent=5 // pred_check_branch
        %311 = sbr.rel (%p309) target = $region48
      $region47: #{tpu_custom_call.1} parent=5 // pred_region
        %s312 = ssub.s32 %s14, 2
        // Predicated region
        $region49: #{tpu_custom_call.1} parent=47 // pred_check
          %p313 = pneg %p137
        $region50: #{tpu_custom_call.1} parent=47 // pred_check_branch
          %315 = sbr.rel (%p313) target = $region52
        $region51: #{tpu_custom_call.1} parent=47 // pred_region
          %s316 = sand.u32 %s122, 1
          %s317 = scalar_lea.sflag [#allocation4], %s316
          %s318 = sand.u32 %s122, 1
          %s319 = smul.addr %s318, 8
          %s320 = scalar_lea.vmem [#allocation5], %s319
          %322 = dma.done %s317, 128
        $region52: #{tpu_custom_call.1} parent=47 // pred_fallthru
          _
      $region48: #{tpu_custom_call.1} parent=5 // pred_fallthru
        _
    $region6: #{tpu_custom_call.1} parent=1 // loop_footer
      %s18 = sadd.s32 1, %s14
    $region7: #{tpu_custom_call.1} parent=1 // loop_footer_branch
      %13 = sbr.rel target = $region3
    $region8: #{tpu_custom_call.1} parent=1 // loop_exit
      _
    %323 = vsyncpa [#allocation3], 1
    %s324 = scalar_lea.sflag [#allocation3], 1
    %325 = vsyncpa %s324, 1
    %326 = vsyncpa [#allocation4], 1
    %s327 = scalar_lea.sflag [#allocation4], 1
    %328 = vsyncpa %s327, 1

</llo_original>
